<compile_context>
chip_gen: v5e
topology: v5e:2x2
jax: 0.10.0
libtpu: 0.0.40
codegen_flags: <defaults>
</compile_context>

<pallas_src>
import functools

import jax
import jax.numpy as jnp
from jax.experimental import pallas as pl
from jax.experimental.pallas import tpu as pltpu

LN_EPS = 1e-5
LANE = 128
SUBLANE = 8
MAX_BATCH_TILE = 1024
BF16_HIDDEN_THRESHOLD = 1024  # bf16 weights only when weight traffic dominates


def _round_up(n, m):
    return (n + m - 1) // m * m


def _layer_norm_padded(h, gamma, beta, n_real):
    """Single-pass LayerNorm over the first `n_real` lanes of a zero-padded block.

    Padded lanes of `h` are exactly zero (weight-column / bias padding is zero),
    so sums over the padded width equal sums over the real width and dividing by
    `n_real` gives exact statistics.  gamma/beta padding is zero, which re-zeroes
    the padded lanes after the affine transform.
    Note: E[x^2]-E[x]^2 can lose precision if |mean| >> std; fine in f32 at the
    1e-5 tolerance for this network.
    """
    s1 = jnp.sum(h, axis=-1, keepdims=True)
    s2 = jnp.sum(h * h, axis=-1, keepdims=True)
    inv_n = 1.0 / n_real
    mean = s1 * inv_n
    var = s2 * inv_n - mean * mean
    return (h - mean) * jax.lax.rsqrt(var + LN_EPS) * gamma + beta


def slot_prediction_kernel(
    x_ref,
    w1_ref, b1_ref, g1_ref, be1_ref,
    w2_ref, b2_ref, g2_ref, be2_ref,
    w3_ref, b3_ref,
    o_ref,
    *, hidden_real,
):
    x = x_ref[...]

    # fc1 -> layer_norm1 -> relu   (dropout == identity in eval mode)
    w1 = w1_ref[...]
    h = jnp.dot(x.astype(w1.dtype), w1, preferred_element_type=jnp.float32) + b1_ref[...]
    h = _layer_norm_padded(h, g1_ref[...], be1_ref[...], hidden_real)
    h = jnp.maximum(h, 0.0)

    # fc2 -> layer_norm2 -> relu
    w2 = w2_ref[...]
    h = jnp.dot(h.astype(w2.dtype), w2, preferred_element_type=jnp.float32) + b2_ref[...]
    h = _layer_norm_padded(h, g2_ref[...], be2_ref[...], hidden_real)
    h = jnp.maximum(h, 0.0)

    # fc3 -> sigmoid   (padded logit columns are exactly 0; sliced off outside)
    w3 = w3_ref[...]
    logits = jnp.dot(h.astype(w3.dtype), w3, preferred_element_type=jnp.float32) + b3_ref[...]
    o_ref[...] = jax.nn.sigmoid(logits).astype(o_ref.dtype)


def prepare_params(params, weight_dtype=None):
    """Zero-pad parameters to lane-dense (multiple-of-128) widths.

    Linear weights optionally cast to bf16 (auto for hidden >= 1024); biases,
    gamma, beta stay f32 and become lane-dense (1, H) rows.
    """
    input_size, hidden = params["w1"].shape
    num_slots = params["w3"].shape[1]
    if weight_dtype is None:
        weight_dtype = jnp.bfloat16 if hidden >= BF16_HIDDEN_THRESHOLD else jnp.float32
    h_pad = _round_up(hidden, LANE)
    s_pad = _round_up(num_slots, LANE)

    def pad2(a, rows, cols):
        return jnp.pad(a, ((0, rows - a.shape[0]), (0, cols - a.shape[1]))).astype(weight_dtype)

    def row(a, cols):  # 1-D (n,) -> lane-dense zero-padded (1, cols) f32 row
        return jnp.pad(a, (0, cols - a.shape[0])).reshape(1, cols).astype(jnp.float32)

    return {
        "w1": pad2(params["w1"], input_size, h_pad),
        "b1": row(params["b1"], h_pad),
        "g1": row(params["g1"], h_pad),
        "be1": row(params["be1"], h_pad),
        "w2": pad2(params["w2"], h_pad, h_pad),
        "b2": row(params["b2"], h_pad),
        "g2": row(params["g2"], h_pad),
        "be2": row(params["be2"], h_pad),
        "w3": pad2(params["w3"], h_pad, s_pad),
        "b3": row(params["b3"], s_pad),
    }


def _vmem_budget_bytes():
    """Per-generation usable VMEM budget (bytes), with compiler-scratch headroom."""
    try:
        cap = int(getattr(pltpu.get_tpu_info(), "vmem_capacity_bytes", 0) or 0)
    except Exception:
        cap = 0
    if cap <= 0:
        return 48 * 2**20                       # unknown chip -> safe everywhere
    if cap <= 64 * 2**20:                       # v7x: 64 MiB per TensorCore
        return cap - 16 * 2**20
    return min(cap - 24 * 2**20, 110 * 2**20)   # v5e / v6e: 128 MiB physical


def slot_prediction_forward(x, padded, *, input_size, hidden_size, num_slots,
                            out_dtype=jnp.float32):
    """x: [batch, input_size] f32.  padded: output of prepare_params."""
    batch = x.shape[0]
    h_pad = padded["w1"].shape[1]
    s_pad = padded["w3"].shape[1]

    weight_args = (
        padded["w1"], padded["b1"], padded["g1"], padded["be1"],
        padded["w2"], padded["b2"], padded["g2"], padded["be2"],
        padded["w3"], padded["b3"],
    )

    # --- VMEM accounting (weights single-buffered, x/out double-buffered) ---
    budget = _vmem_budget_bytes()
    weight_bytes = sum(int(w.size) * w.dtype.itemsize for w in weight_args)
    out_isz = jnp.dtype(out_dtype).itemsize
    # per-row: 2x input tile + 2x output tile (double-buffered) + activation temps
    bytes_per_row = 2 * input_size * 4 + 2 * s_pad * out_isz + 8 * h_pad * 4
    avail = max(budget - weight_bytes, SUBLANE * bytes_per_row)
    max_rows_by_vmem = max(SUBLANE, (avail // bytes_per_row) // SUBLANE * SUBLANE)

    # --- batch tiling: no wrapper-side jnp.pad; >=2 steps for v7x megacore ---
    if batch <= SUBLANE:
        tile_b = batch                       # full-dim block, single step
    else:
        n_tiles = max(pl.cdiv(batch, MAX_BATCH_TILE), 2)
        tile_b = _round_up(pl.cdiv(batch, n_tiles), SUBLANE)
        tile_b = max(SUBLANE, min(tile_b, int(max_rows_by_vmem), MAX_BATCH_TILE))
    grid = (pl.cdiv(batch, tile_b),)

    vmem_limit = int(min(budget, weight_bytes + tile_b * bytes_per_row + 4 * 2**20))
    vmem_limit = max(vmem_limit, 16 * 2**20)

    kernel = functools.partial(slot_prediction_kernel, hidden_real=hidden_size)

    def _run(single_buffer_weights):
        if single_buffer_weights:
            # Constant index_map -> DMA'd once; Buffered(1) avoids the default
            # 2x double-buffer residency for parameters.
            weight_specs = [
                pl.BlockSpec(w.shape, lambda i: (0, 0), pipeline_mode=pl.Buffered(1))
                for w in weight_args
            ]
        else:
            weight_specs = [pl.BlockSpec(w.shape, lambda i: (0, 0)) for w in weight_args]
        in_specs = [pl.BlockSpec((tile_b, input_size), lambda i: (i, 0))] + weight_specs
        out_spec = pl.BlockSpec((tile_b, s_pad), lambda i: (i, 0))
        return pl.pallas_call(
            kernel,
            out_shape=jax.ShapeDtypeStruct((batch, s_pad), out_dtype),
            grid=grid,
            in_specs=in_specs,
            out_specs=out_spec,
            compiler_params=pltpu.CompilerParams(
                dimension_semantics=("parallel",),   # shard batch tiles across TCs
                vmem_limit_bytes=vmem_limit,
            ),
        )(x, *weight_args)

    try:
        out = _run(True)
    except Exception:
        # pl.Buffered(1) not accepted by this jax/Mosaic build -> fall back to
        # default double-buffered weight specs (correct, slightly more VMEM).
        out = _run(False)

    # TODO(synk): the [:, :num_slots] slice is one extra (small) HBM pass over
    # the output; fuse into the consumer / emit bf16 if it ever matters.
    return out[:, :num_slots]


def init_params(key, input_size, hidden_size, num_slots):
    """Deterministic synthetic parameter init (Linear weights stored [in, out])."""
    ks = jax.random.split(key, 6)

    def lin(kw, kb, fan_in, fan_out):
        bound = 1.0 / jnp.sqrt(fan_in)
        w = jax.random.uniform(kw, (fan_in, fan_out), jnp.float32, -bound, bound)
        b = jax.random.uniform(kb, (fan_out,), jnp.float32, -bound, bound)
        return w, b

    w1, b1 = lin(ks[0], ks[1], input_size, hidden_size)
    w2, b2 = lin(ks[2], ks[3], hidden_size, hidden_size)
    w3, b3 = lin(ks[4], ks[5], hidden_size, num_slots)
    return {
        "w1": w1, "b1": b1,
        "g1": jnp.ones((hidden_size,), jnp.float32),
        "be1": jnp.zeros((hidden_size,), jnp.float32),
        "w2": w2, "b2": b2,
        "g2": jnp.ones((hidden_size,), jnp.float32),
        "be2": jnp.zeros((hidden_size,), jnp.float32),
        "w3": w3, "b3": b3,
    }


def reference_forward(x, p):
    """Pure-JAX reference of the PyTorch forward (eval mode)."""
    def ln(h, g, b):
        m = jnp.mean(h, axis=-1, keepdims=True)
        v = jnp.mean((h - m) ** 2, axis=-1, keepdims=True)
        return (h - m) / jnp.sqrt(v + LN_EPS) * g + b

    h = jnp.maximum(ln(x @ p["w1"] + p["b1"], p["g1"], p["be1"]), 0.0)
    h = jnp.maximum(ln(h @ p["w2"] + p["b2"], p["g2"], p["be2"]), 0.0)
    return jax.nn.sigmoid(h @ p["w3"] + p["b3"])


if __name__ == "__main__":
    batch, input_size, hidden_size, num_slots = 8, 32, 32, 16

    key = jax.random.PRNGKey(0)
    k_x, k_p = jax.random.split(key)
    x = jax.random.normal(k_x, (batch, input_size), jnp.float32)
    params = init_params(k_p, input_size, hidden_size, num_slots)
    padded = prepare_params(params)          # f32 weights at this hidden size

    out = slot_prediction_forward(
        x, padded,
        input_size=input_size, hidden_size=hidden_size, num_slots=num_slots,
    )
    out = jax.block_until_ready(out)

    ref = reference_forward(x, params)
    assert out.shape == (batch, num_slots)
    assert jnp.allclose(out, ref, atol=1e-5, rtol=1e-5), "mismatch vs reference"

    print("KERNEL_OK")
</pallas_src>

<mosaic_0001>
module attributes {stable_mosaic.version = 11 : i64} {
  func.func @slot_prediction_kernel(%arg0: i32, %arg1: memref<8x32xf32, #tpu.memory_space<vmem>>, %arg2: memref<32x128xf32, #tpu.memory_space<vmem>>, %arg3: memref<1x128xf32, #tpu.memory_space<vmem>>, %arg4: memref<1x128xf32, #tpu.memory_space<vmem>>, %arg5: memref<1x128xf32, #tpu.memory_space<vmem>>, %arg6: memref<128x128xf32, #tpu.memory_space<vmem>>, %arg7: memref<1x128xf32, #tpu.memory_space<vmem>>, %arg8: memref<1x128xf32, #tpu.memory_space<vmem>>, %arg9: memref<1x128xf32, #tpu.memory_space<vmem>>, %arg10: memref<128x128xf32, #tpu.memory_space<vmem>>, %arg11: memref<1x128xf32, #tpu.memory_space<vmem>>, %arg12: memref<8x128xf32, #tpu.memory_space<vmem>>) attributes {dimension_semantics = [#tpu.dimension_semantics<parallel>], iteration_bounds = array<i64: 1>, scalar_prefetch = 0 : i64, scratch_operands = 0 : i64, tpu.core_type = #tpu.core_type<tc>, window_params = [{transform_indices = @transform_0, window_bounds = array<i64: 8, 32>}, {pipeline_mode = #tpu.pipeline_mode<synchronous>, transform_indices = @transform_1, window_bounds = array<i64: 32, 128>}, {pipeline_mode = #tpu.pipeline_mode<synchronous>, transform_indices = @transform_2, window_bounds = array<i64: 1, 128>}, {pipeline_mode = #tpu.pipeline_mode<synchronous>, transform_indices = @transform_3, window_bounds = array<i64: 1, 128>}, {pipeline_mode = #tpu.pipeline_mode<synchronous>, transform_indices = @transform_4, window_bounds = array<i64: 1, 128>}, {pipeline_mode = #tpu.pipeline_mode<synchronous>, transform_indices = @transform_5, window_bounds = array<i64: 128, 128>}, {pipeline_mode = #tpu.pipeline_mode<synchronous>, transform_indices = @transform_6, window_bounds = array<i64: 1, 128>}, {pipeline_mode = #tpu.pipeline_mode<synchronous>, transform_indices = @transform_7, window_bounds = array<i64: 1, 128>}, {pipeline_mode = #tpu.pipeline_mode<synchronous>, transform_indices = @transform_8, window_bounds = array<i64: 1, 128>}, {pipeline_mode = #tpu.pipeline_mode<synchronous>, transform_indices = @transform_9, window_bounds = array<i64: 128, 128>}, {pipeline_mode = #tpu.pipeline_mode<synchronous>, transform_indices = @transform_10, window_bounds = array<i64: 1, 128>}, {transform_indices = @transform_11, window_bounds = array<i64: 8, 128>}]} {
    %c0 = arith.constant 0 : index
    %c0_0 = arith.constant 0 : index
    %0 = vector.load %arg1[%c0, %c0_0] : memref<8x32xf32, #tpu.memory_space<vmem>>, vector<8x32xf32>
    %c0_1 = arith.constant 0 : index
    %c0_2 = arith.constant 0 : index
    %1 = vector.load %arg2[%c0_1, %c0_2] : memref<32x128xf32, #tpu.memory_space<vmem>>, vector<32x128xf32>
    %cst = arith.constant dense<0.000000e+00> : vector<8x128xf32>
    %2 = tpu.matmul %0, %1, %cst {dimension_numbers = #tpu.dot_dimension_numbers<[1], [0], [0], [1], [0, 0, 1, 1], [], []>} : vector<8x32xf32>, vector<32x128xf32>, vector<8x128xf32> -> vector<8x128xf32>
    %c0_3 = arith.constant 0 : index
    %c0_4 = arith.constant 0 : index
    %3 = vector.load %arg3[%c0_3, %c0_4] : memref<1x128xf32, #tpu.memory_space<vmem>>, vector<1x128xf32>
    %4 = vector.broadcast %3 : vector<1x128xf32> to vector<8x128xf32>
    %5 = arith.addf %2, %4 : vector<8x128xf32>
    %c0_5 = arith.constant 0 : index
    %c0_6 = arith.constant 0 : index
    %6 = vector.load %arg4[%c0_5, %c0_6] : memref<1x128xf32, #tpu.memory_space<vmem>>, vector<1x128xf32>
    %c0_7 = arith.constant 0 : index
    %c0_8 = arith.constant 0 : index
    %7 = vector.load %arg5[%c0_7, %c0_8] : memref<1x128xf32, #tpu.memory_space<vmem>>, vector<1x128xf32>
    %cst_9 = arith.constant dense<0.000000e+00> : vector<8xf32>
    %8 = vector.multi_reduction <add>, %5, %cst_9 [1] : vector<8x128xf32> to vector<8xf32>
    %9 = vector.shape_cast %8 : vector<8xf32> to vector<8x1xf32>
    %10 = arith.mulf %5, %5 : vector<8x128xf32>
    %cst_10 = arith.constant dense<0.000000e+00> : vector<8xf32>
    %11 = vector.multi_reduction <add>, %10, %cst_10 [1] : vector<8x128xf32> to vector<8xf32>
    %12 = vector.shape_cast %11 : vector<8xf32> to vector<8x1xf32>
    %cst_11 = arith.constant 3.125000e-02 : f32
    %13 = vector.broadcast %cst_11 : f32 to vector<8x1xf32>
    %14 = arith.mulf %9, %13 : vector<8x1xf32>
    %cst_12 = arith.constant 3.125000e-02 : f32
    %15 = vector.broadcast %cst_12 : f32 to vector<8x1xf32>
    %16 = arith.mulf %12, %15 : vector<8x1xf32>
    %17 = arith.mulf %14, %14 : vector<8x1xf32>
    %18 = arith.subf %16, %17 : vector<8x1xf32>
    %19 = vector.broadcast %14 : vector<8x1xf32> to vector<8x128xf32>
    %20 = arith.subf %5, %19 : vector<8x128xf32>
    %cst_13 = arith.constant 9.99999974E-6 : f32
    %21 = vector.broadcast %cst_13 : f32 to vector<8x1xf32>
    %22 = arith.addf %18, %21 : vector<8x1xf32>
    %23 = math.rsqrt %22 : vector<8x1xf32>
    %24 = vector.broadcast %23 : vector<8x1xf32> to vector<8x128xf32>
    %25 = arith.mulf %20, %24 : vector<8x128xf32>
    %26 = vector.broadcast %6 : vector<1x128xf32> to vector<8x128xf32>
    %27 = arith.mulf %25, %26 : vector<8x128xf32>
    %28 = vector.broadcast %7 : vector<1x128xf32> to vector<8x128xf32>
    %29 = arith.addf %27, %28 : vector<8x128xf32>
    %cst_14 = arith.constant 0.000000e+00 : f32
    %30 = vector.broadcast %cst_14 : f32 to vector<8x128xf32>
    %31 = arith.maximumf %29, %30 : vector<8x128xf32>
    %c0_15 = arith.constant 0 : index
    %c0_16 = arith.constant 0 : index
    %32 = vector.load %arg6[%c0_15, %c0_16] : memref<128x128xf32, #tpu.memory_space<vmem>>, vector<128x128xf32>
    %cst_17 = arith.constant dense<0.000000e+00> : vector<8x128xf32>
    %33 = tpu.matmul %31, %32, %cst_17 {dimension_numbers = #tpu.dot_dimension_numbers<[1], [0], [0], [1], [0, 0, 1, 1], [], []>} : vector<8x128xf32>, vector<128x128xf32>, vector<8x128xf32> -> vector<8x128xf32>
    %c0_18 = arith.constant 0 : index
    %c0_19 = arith.constant 0 : index
    %34 = vector.load %arg7[%c0_18, %c0_19] : memref<1x128xf32, #tpu.memory_space<vmem>>, vector<1x128xf32>
    %35 = vector.broadcast %34 : vector<1x128xf32> to vector<8x128xf32>
    %36 = arith.addf %33, %35 : vector<8x128xf32>
    %c0_20 = arith.constant 0 : index
    %c0_21 = arith.constant 0 : index
    %37 = vector.load %arg8[%c0_20, %c0_21] : memref<1x128xf32, #tpu.memory_space<vmem>>, vector<1x128xf32>
    %c0_22 = arith.constant 0 : index
    %c0_23 = arith.constant 0 : index
    %38 = vector.load %arg9[%c0_22, %c0_23] : memref<1x128xf32, #tpu.memory_space<vmem>>, vector<1x128xf32>
    %cst_24 = arith.constant dense<0.000000e+00> : vector<8xf32>
    %39 = vector.multi_reduction <add>, %36, %cst_24 [1] : vector<8x128xf32> to vector<8xf32>
    %40 = vector.shape_cast %39 : vector<8xf32> to vector<8x1xf32>
    %41 = arith.mulf %36, %36 : vector<8x128xf32>
    %cst_25 = arith.constant dense<0.000000e+00> : vector<8xf32>
    %42 = vector.multi_reduction <add>, %41, %cst_25 [1] : vector<8x128xf32> to vector<8xf32>
    %43 = vector.shape_cast %42 : vector<8xf32> to vector<8x1xf32>
    %cst_26 = arith.constant 3.125000e-02 : f32
    %44 = vector.broadcast %cst_26 : f32 to vector<8x1xf32>
    %45 = arith.mulf %40, %44 : vector<8x1xf32>
    %cst_27 = arith.constant 3.125000e-02 : f32
    %46 = vector.broadcast %cst_27 : f32 to vector<8x1xf32>
    %47 = arith.mulf %43, %46 : vector<8x1xf32>
    %48 = arith.mulf %45, %45 : vector<8x1xf32>
    %49 = arith.subf %47, %48 : vector<8x1xf32>
    %50 = vector.broadcast %45 : vector<8x1xf32> to vector<8x128xf32>
    %51 = arith.subf %36, %50 : vector<8x128xf32>
    %cst_28 = arith.constant 9.99999974E-6 : f32
    %52 = vector.broadcast %cst_28 : f32 to vector<8x1xf32>
    %53 = arith.addf %49, %52 : vector<8x1xf32>
    %54 = math.rsqrt %53 : vector<8x1xf32>
    %55 = vector.broadcast %54 : vector<8x1xf32> to vector<8x128xf32>
    %56 = arith.mulf %51, %55 : vector<8x128xf32>
    %57 = vector.broadcast %37 : vector<1x128xf32> to vector<8x128xf32>
    %58 = arith.mulf %56, %57 : vector<8x128xf32>
    %59 = vector.broadcast %38 : vector<1x128xf32> to vector<8x128xf32>
    %60 = arith.addf %58, %59 : vector<8x128xf32>
    %cst_29 = arith.constant 0.000000e+00 : f32
    %61 = vector.broadcast %cst_29 : f32 to vector<8x128xf32>
    %62 = arith.maximumf %60, %61 : vector<8x128xf32>
    %c0_30 = arith.constant 0 : index
    %c0_31 = arith.constant 0 : index
    %63 = vector.load %arg10[%c0_30, %c0_31] : memref<128x128xf32, #tpu.memory_space<vmem>>, vector<128x128xf32>
    %cst_32 = arith.constant dense<0.000000e+00> : vector<8x128xf32>
    %64 = tpu.matmul %62, %63, %cst_32 {dimension_numbers = #tpu.dot_dimension_numbers<[1], [0], [0], [1], [0, 0, 1, 1], [], []>} : vector<8x128xf32>, vector<128x128xf32>, vector<8x128xf32> -> vector<8x128xf32>
    %c0_33 = arith.constant 0 : index
    %c0_34 = arith.constant 0 : index
    %65 = vector.load %arg11[%c0_33, %c0_34] : memref<1x128xf32, #tpu.memory_space<vmem>>, vector<1x128xf32>
    %66 = vector.broadcast %65 : vector<1x128xf32> to vector<8x128xf32>
    %67 = arith.addf %64, %66 : vector<8x128xf32>
    %68 = arith.negf %67 : vector<8x128xf32>
    %69 = math.exp %68 : vector<8x128xf32>
    %cst_35 = arith.constant 1.000000e+00 : f32
    %70 = vector.broadcast %cst_35 : f32 to vector<8x128xf32>
    %71 = arith.addf %70, %69 : vector<8x128xf32>
    %72 = arith.divf %70, %71 : vector<8x128xf32>
    %c0_36 = arith.constant 0 : index
    %c0_37 = arith.constant 0 : index
    %73 = vector.load %arg12[%c0_36, %c0_37] : memref<8x128xf32, #tpu.memory_space<vmem>>, vector<8x128xf32>
    tpu.vector_store %arg12[%c0_36, %c0_37], %72 {strides = array<i32>} : memref<8x128xf32, #tpu.memory_space<vmem>>, vector<8x128xf32>,
    return
  }
  func.func @transform_0(%arg0: i32) -> (i32, i32) {
    %c0_i32 = arith.constant 0 : i32
    %c0_i32_0 = arith.constant 0 : i32
    return %arg0, %c0_i32 : i32, i32
  }
  func.func @transform_1(%arg0: i32) -> (i32, i32) {
    %c0_i32 = arith.constant 0 : i32
    %c0_i32_0 = arith.constant 0 : i32
    %c0_i32_1 = arith.constant 0 : i32
    return %c0_i32, %c0_i32_0 : i32, i32
  }
  func.func @transform_2(%arg0: i32) -> (i32, i32) {
    %c0_i32 = arith.constant 0 : i32
    %c0_i32_0 = arith.constant 0 : i32
    %c0_i32_1 = arith.constant 0 : i32
    return %c0_i32, %c0_i32_0 : i32, i32
  }
  func.func @transform_3(%arg0: i32) -> (i32, i32) {
    %c0_i32 = arith.constant 0 : i32
    %c0_i32_0 = arith.constant 0 : i32
    %c0_i32_1 = arith.constant 0 : i32
    return %c0_i32, %c0_i32_0 : i32, i32
  }
  func.func @transform_4(%arg0: i32) -> (i32, i32) {
    %c0_i32 = arith.constant 0 : i32
    %c0_i32_0 = arith.constant 0 : i32
    %c0_i32_1 = arith.constant 0 : i32
    return %c0_i32, %c0_i32_0 : i32, i32
  }
  func.func @transform_5(%arg0: i32) -> (i32, i32) {
    %c0_i32 = arith.constant 0 : i32
    %c0_i32_0 = arith.constant 0 : i32
    %c0_i32_1 = arith.constant 0 : i32
    return %c0_i32, %c0_i32_0 : i32, i32
  }
  func.func @transform_6(%arg0: i32) -> (i32, i32) {
    %c0_i32 = arith.constant 0 : i32
    %c0_i32_0 = arith.constant 0 : i32
    %c0_i32_1 = arith.constant 0 : i32
    return %c0_i32, %c0_i32_0 : i32, i32
  }
  func.func @transform_7(%arg0: i32) -> (i32, i32) {
    %c0_i32 = arith.constant 0 : i32
    %c0_i32_0 = arith.constant 0 : i32
    %c0_i32_1 = arith.constant 0 : i32
    return %c0_i32, %c0_i32_0 : i32, i32
  }
  func.func @transform_8(%arg0: i32) -> (i32, i32) {
    %c0_i32 = arith.constant 0 : i32
    %c0_i32_0 = arith.constant 0 : i32
    %c0_i32_1 = arith.constant 0 : i32
    return %c0_i32, %c0_i32_0 : i32, i32
  }
  func.func @transform_9(%arg0: i32) -> (i32, i32) {
    %c0_i32 = arith.constant 0 : i32
    %c0_i32_0 = arith.constant 0 : i32
    %c0_i32_1 = arith.constant 0 : i32
    return %c0_i32, %c0_i32_0 : i32, i32
  }
  func.func @transform_10(%arg0: i32) -> (i32, i32) {
    %c0_i32 = arith.constant 0 : i32
    %c0_i32_0 = arith.constant 0 : i32
    %c0_i32_1 = arith.constant 0 : i32
    return %c0_i32, %c0_i32_0 : i32, i32
  }
  func.func @transform_11(%arg0: i32) -> (i32, i32) {
    %c0_i32 = arith.constant 0 : i32
    %c0_i32_0 = arith.constant 0 : i32
    return %arg0, %c0_i32 : i32, i32
  }
}

module attributes {stable_mosaic.version = 11 : i64} {
  func.func @slot_prediction_kernel(%arg0: i32, %arg1: memref<8x32xf32, #tpu.memory_space<vmem>>, %arg2: memref<32x128xf32, #tpu.memory_space<vmem>>, %arg3: memref<1x128xf32, #tpu.memory_space<vmem>>, %arg4: memref<1x128xf32, #tpu.memory_space<vmem>>, %arg5: memref<1x128xf32, #tpu.memory_space<vmem>>, %arg6: memref<128x128xf32, #tpu.memory_space<vmem>>, %arg7: memref<1x128xf32, #tpu.memory_space<vmem>>, %arg8: memref<1x128xf32, #tpu.memory_space<vmem>>, %arg9: memref<1x128xf32, #tpu.memory_space<vmem>>, %arg10: memref<128x128xf32, #tpu.memory_space<vmem>>, %arg11: memref<1x128xf32, #tpu.memory_space<vmem>>, %arg12: memref<8x128xf32, #tpu.memory_space<vmem>>) attributes {dimension_semantics = [#tpu.dimension_semantics<parallel>], iteration_bounds = array<i64: 1>, scalar_prefetch = 0 : i64, scratch_operands = 0 : i64, tpu.core_type = #tpu.core_type<tc>, window_params = [{transform_indices = @transform_0, window_bounds = array<i64: 8, 32>}, {pipeline_mode = #tpu.pipeline_mode<synchronous>, transform_indices = @transform_1, window_bounds = array<i64: 32, 128>}, {pipeline_mode = #tpu.pipeline_mode<synchronous>, transform_indices = @transform_2, window_bounds = array<i64: 1, 128>}, {pipeline_mode = #tpu.pipeline_mode<synchronous>, transform_indices = @transform_3, window_bounds = array<i64: 1, 128>}, {pipeline_mode = #tpu.pipeline_mode<synchronous>, transform_indices = @transform_4, window_bounds = array<i64: 1, 128>}, {pipeline_mode = #tpu.pipeline_mode<synchronous>, transform_indices = @transform_5, window_bounds = array<i64: 128, 128>}, {pipeline_mode = #tpu.pipeline_mode<synchronous>, transform_indices = @transform_6, window_bounds = array<i64: 1, 128>}, {pipeline_mode = #tpu.pipeline_mode<synchronous>, transform_indices = @transform_7, window_bounds = array<i64: 1, 128>}, {pipeline_mode = #tpu.pipeline_mode<synchronous>, transform_indices = @transform_8, window_bounds = array<i64: 1, 128>}, {pipeline_mode = #tpu.pipeline_mode<synchronous>, transform_indices = @transform_9, window_bounds = array<i64: 128, 128>}, {pipeline_mode = #tpu.pipeline_mode<synchronous>, transform_indices = @transform_10, window_bounds = array<i64: 1, 128>}, {transform_indices = @transform_11, window_bounds = array<i64: 8, 128>}]} {
    %c0 = arith.constant 0 : index
    %c0_0 = arith.constant 0 : index
    %0 = vector.load %arg1[%c0, %c0_0] : memref<8x32xf32, #tpu.memory_space<vmem>>, vector<8x32xf32>
    %c0_1 = arith.constant 0 : index
    %c0_2 = arith.constant 0 : index
    %1 = vector.load %arg2[%c0_1, %c0_2] : memref<32x128xf32, #tpu.memory_space<vmem>>, vector<32x128xf32>
    %cst = arith.constant dense<0.000000e+00> : vector<8x128xf32>
    %2 = tpu.matmul %0, %1, %cst {dimension_numbers = #tpu.dot_dimension_numbers<[1], [0], [0], [1], [0, 0, 1, 1], [], []>} : vector<8x32xf32>, vector<32x128xf32>, vector<8x128xf32> -> vector<8x128xf32>
    %c0_3 = arith.constant 0 : index
    %c0_4 = arith.constant 0 : index
    %3 = vector.load %arg3[%c0_3, %c0_4] : memref<1x128xf32, #tpu.memory_space<vmem>>, vector<1x128xf32>
    %4 = vector.broadcast %3 : vector<1x128xf32> to vector<8x128xf32>
    %5 = arith.addf %2, %4 : vector<8x128xf32>
    %c0_5 = arith.constant 0 : index
    %c0_6 = arith.constant 0 : index
    %6 = vector.load %arg4[%c0_5, %c0_6] : memref<1x128xf32, #tpu.memory_space<vmem>>, vector<1x128xf32>
    %c0_7 = arith.constant 0 : index
    %c0_8 = arith.constant 0 : index
    %7 = vector.load %arg5[%c0_7, %c0_8] : memref<1x128xf32, #tpu.memory_space<vmem>>, vector<1x128xf32>
    %cst_9 = arith.constant dense<0.000000e+00> : vector<8xf32>
    %8 = vector.multi_reduction <add>, %5, %cst_9 [1] : vector<8x128xf32> to vector<8xf32>
    %9 = vector.shape_cast %8 : vector<8xf32> to vector<8x1xf32>
    %10 = arith.mulf %5, %5 : vector<8x128xf32>
    %cst_10 = arith.constant dense<0.000000e+00> : vector<8xf32>
    %11 = vector.multi_reduction <add>, %10, %cst_10 [1] : vector<8x128xf32> to vector<8xf32>
    %12 = vector.shape_cast %11 : vector<8xf32> to vector<8x1xf32>
    %cst_11 = arith.constant 3.125000e-02 : f32
    %13 = vector.broadcast %cst_11 : f32 to vector<8x1xf32>
    %14 = arith.mulf %9, %13 : vector<8x1xf32>
    %cst_12 = arith.constant 3.125000e-02 : f32
    %15 = vector.broadcast %cst_12 : f32 to vector<8x1xf32>
    %16 = arith.mulf %12, %15 : vector<8x1xf32>
    %17 = arith.mulf %14, %14 : vector<8x1xf32>
    %18 = arith.subf %16, %17 : vector<8x1xf32>
    %19 = vector.broadcast %14 : vector<8x1xf32> to vector<8x128xf32>
    %20 = arith.subf %5, %19 : vector<8x128xf32>
    %cst_13 = arith.constant 9.99999974E-6 : f32
    %21 = vector.broadcast %cst_13 : f32 to vector<8x1xf32>
    %22 = arith.addf %18, %21 : vector<8x1xf32>
    %23 = math.rsqrt %22 : vector<8x1xf32>
    %24 = vector.broadcast %23 : vector<8x1xf32> to vector<8x128xf32>
    %25 = arith.mulf %20, %24 : vector<8x128xf32>
    %26 = vector.broadcast %6 : vector<1x128xf32> to vector<8x128xf32>
    %27 = arith.mulf %25, %26 : vector<8x128xf32>
    %28 = vector.broadcast %7 : vector<1x128xf32> to vector<8x128xf32>
    %29 = arith.addf %27, %28 : vector<8x128xf32>
    %cst_14 = arith.constant 0.000000e+00 : f32
    %30 = vector.broadcast %cst_14 : f32 to vector<8x128xf32>
    %31 = arith.maximumf %29, %30 : vector<8x128xf32>
    %c0_15 = arith.constant 0 : index
    %c0_16 = arith.constant 0 : index
    %32 = vector.load %arg6[%c0_15, %c0_16] : memref<128x128xf32, #tpu.memory_space<vmem>>, vector<128x128xf32>
    %cst_17 = arith.constant dense<0.000000e+00> : vector<8x128xf32>
    %33 = tpu.matmul %31, %32, %cst_17 {dimension_numbers = #tpu.dot_dimension_numbers<[1], [0], [0], [1], [0, 0, 1, 1], [], []>} : vector<8x128xf32>, vector<128x128xf32>, vector<8x128xf32> -> vector<8x128xf32>
    %c0_18 = arith.constant 0 : index
    %c0_19 = arith.constant 0 : index
    %34 = vector.load %arg7[%c0_18, %c0_19] : memref<1x128xf32, #tpu.memory_space<vmem>>, vector<1x128xf32>
    %35 = vector.broadcast %34 : vector<1x128xf32> to vector<8x128xf32>
    %36 = arith.addf %33, %35 : vector<8x128xf32>
    %c0_20 = arith.constant 0 : index
    %c0_21 = arith.constant 0 : index
    %37 = vector.load %arg8[%c0_20, %c0_21] : memref<1x128xf32, #tpu.memory_space<vmem>>, vector<1x128xf32>
    %c0_22 = arith.constant 0 : index
    %c0_23 = arith.constant 0 : index
    %38 = vector.load %arg9[%c0_22, %c0_23] : memref<1x128xf32, #tpu.memory_space<vmem>>, vector<1x128xf32>
    %cst_24 = arith.constant dense<0.000000e+00> : vector<8xf32>
    %39 = vector.multi_reduction <add>, %36, %cst_24 [1] : vector<8x128xf32> to vector<8xf32>
    %40 = vector.shape_cast %39 : vector<8xf32> to vector<8x1xf32>
    %41 = arith.mulf %36, %36 : vector<8x128xf32>
    %cst_25 = arith.constant dense<0.000000e+00> : vector<8xf32>
    %42 = vector.multi_reduction <add>, %41, %cst_25 [1] : vector<8x128xf32> to vector<8xf32>
    %43 = vector.shape_cast %42 : vector<8xf32> to vector<8x1xf32>
    %cst_26 = arith.constant 3.125000e-02 : f32
    %44 = vector.broadcast %cst_26 : f32 to vector<8x1xf32>
    %45 = arith.mulf %40, %44 : vector<8x1xf32>
    %cst_27 = arith.constant 3.125000e-02 : f32
    %46 = vector.broadcast %cst_27 : f32 to vector<8x1xf32>
    %47 = arith.mulf %43, %46 : vector<8x1xf32>
    %48 = arith.mulf %45, %45 : vector<8x1xf32>
    %49 = arith.subf %47, %48 : vector<8x1xf32>
    %50 = vector.broadcast %45 : vector<8x1xf32> to vector<8x128xf32>
    %51 = arith.subf %36, %50 : vector<8x128xf32>
    %cst_28 = arith.constant 9.99999974E-6 : f32
    %52 = vector.broadcast %cst_28 : f32 to vector<8x1xf32>
    %53 = arith.addf %49, %52 : vector<8x1xf32>
    %54 = math.rsqrt %53 : vector<8x1xf32>
    %55 = vector.broadcast %54 : vector<8x1xf32> to vector<8x128xf32>
    %56 = arith.mulf %51, %55 : vector<8x128xf32>
    %57 = vector.broadcast %37 : vector<1x128xf32> to vector<8x128xf32>
    %58 = arith.mulf %56, %57 : vector<8x128xf32>
    %59 = vector.broadcast %38 : vector<1x128xf32> to vector<8x128xf32>
    %60 = arith.addf %58, %59 : vector<8x128xf32>
    %cst_29 = arith.constant 0.000000e+00 : f32
    %61 = vector.broadcast %cst_29 : f32 to vector<8x128xf32>
    %62 = arith.maximumf %60, %61 : vector<8x128xf32>
    %c0_30 = arith.constant 0 : index
    %c0_31 = arith.constant 0 : index
    %63 = vector.load %arg10[%c0_30, %c0_31] : memref<128x128xf32, #tpu.memory_space<vmem>>, vector<128x128xf32>
    %cst_32 = arith.constant dense<0.000000e+00> : vector<8x128xf32>
    %64 = tpu.matmul %62, %63, %cst_32 {dimension_numbers = #tpu.dot_dimension_numbers<[1], [0], [0], [1], [0, 0, 1, 1], [], []>} : vector<8x128xf32>, vector<128x128xf32>, vector<8x128xf32> -> vector<8x128xf32>
    %c0_33 = arith.constant 0 : index
    %c0_34 = arith.constant 0 : index
    %65 = vector.load %arg11[%c0_33, %c0_34] : memref<1x128xf32, #tpu.memory_space<vmem>>, vector<1x128xf32>
    %66 = vector.broadcast %65 : vector<1x128xf32> to vector<8x128xf32>
    %67 = arith.addf %64, %66 : vector<8x128xf32>
    %68 = arith.negf %67 : vector<8x128xf32>
    %69 = math.exp %68 : vector<8x128xf32>
    %cst_35 = arith.constant 1.000000e+00 : f32
    %70 = vector.broadcast %cst_35 : f32 to vector<8x128xf32>
    %71 = arith.addf %70, %69 : vector<8x128xf32>
    %72 = arith.divf %70, %71 : vector<8x128xf32>
    %c0_36 = arith.constant 0 : index
    %c0_37 = arith.constant 0 : index
    %73 = vector.load %arg12[%c0_36, %c0_37] : memref<8x128xf32, #tpu.memory_space<vmem>>, vector<8x128xf32>
    tpu.vector_store %arg12[%c0_36, %c0_37], %72 {strides = array<i32>} : memref<8x128xf32, #tpu.memory_space<vmem>>, vector<8x128xf32>,
    return
  }
  func.func @transform_0(%arg0: i32) -> (i32, i32) {
    %c0_i32 = arith.constant 0 : i32
    %c0_i32_0 = arith.constant 0 : i32
    return %arg0, %c0_i32 : i32, i32
  }
  func.func @transform_1(%arg0: i32) -> (i32, i32) {
    %c0_i32 = arith.constant 0 : i32
    %c0_i32_0 = arith.constant 0 : i32
    %c0_i32_1 = arith.constant 0 : i32
    return %c0_i32, %c0_i32_0 : i32, i32
  }
  func.func @transform_2(%arg0: i32) -> (i32, i32) {
    %c0_i32 = arith.constant 0 : i32
    %c0_i32_0 = arith.constant 0 : i32
    %c0_i32_1 = arith.constant 0 : i32
    return %c0_i32, %c0_i32_0 : i32, i32
  }
  func.func @transform_3(%arg0: i32) -> (i32, i32) {
    %c0_i32 = arith.constant 0 : i32
    %c0_i32_0 = arith.constant 0 : i32
    %c0_i32_1 = arith.constant 0 : i32
    return %c0_i32, %c0_i32_0 : i32, i32
  }
  func.func @transform_4(%arg0: i32) -> (i32, i32) {
    %c0_i32 = arith.constant 0 : i32
    %c0_i32_0 = arith.constant 0 : i32
    %c0_i32_1 = arith.constant 0 : i32
    return %c0_i32, %c0_i32_0 : i32, i32
  }
  func.func @transform_5(%arg0: i32) -> (i32, i32) {
    %c0_i32 = arith.constant 0 : i32
    %c0_i32_0 = arith.constant 0 : i32
    %c0_i32_1 = arith.constant 0 : i32
    return %c0_i32, %c0_i32_0 : i32, i32
  }
  func.func @transform_6(%arg0: i32) -> (i32, i32) {
    %c0_i32 = arith.constant 0 : i32
    %c0_i32_0 = arith.constant 0 : i32
    %c0_i32_1 = arith.constant 0 : i32
    return %c0_i32, %c0_i32_0 : i32, i32
  }
  func.func @transform_7(%arg0: i32) -> (i32, i32) {
    %c0_i32 = arith.constant 0 : i32
    %c0_i32_0 = arith.constant 0 : i32
    %c0_i32_1 = arith.constant 0 : i32
    return %c0_i32, %c0_i32_0 : i32, i32
  }
  func.func @transform_8(%arg0: i32) -> (i32, i32) {
    %c0_i32 = arith.constant 0 : i32
    %c0_i32_0 = arith.constant 0 : i32
    %c0_i32_1 = arith.constant 0 : i32
    return %c0_i32, %c0_i32_0 : i32, i32
  }
  func.func @transform_9(%arg0: i32) -> (i32, i32) {
    %c0_i32 = arith.constant 0 : i32
    %c0_i32_0 = arith.constant 0 : i32
    %c0_i32_1 = arith.constant 0 : i32
    return %c0_i32, %c0_i32_0 : i32, i32
  }
  func.func @transform_10(%arg0: i32) -> (i32, i32) {
    %c0_i32 = arith.constant 0 : i32
    %c0_i32_0 = arith.constant 0 : i32
    %c0_i32_1 = arith.constant 0 : i32
    return %c0_i32, %c0_i32_0 : i32, i32
  }
  func.func @transform_11(%arg0: i32) -> (i32, i32) {
    %c0_i32 = arith.constant 0 : i32
    %c0_i32_0 = arith.constant 0 : i32
    return %arg0, %c0_i32 : i32, i32
  }
}

</mosaic_0001>

<llo_original>
// kernel: tpu_custom_call.1
$region0: #{tpu_custom_call.1}
  #allocation0 [shape = 'u32[]', space=smem, size = 0x4, offset = 0x4, fixed_abs, tag = 'smem constant byte address 0x4 - core index']
  #allocation1 [shape = 'u32[72,128]{1,0:T(1,128)}', space=vmem, size = 0x9000, scoped, tag = 'internal scratch']
  %s0 = inlined_call_operand.hbm [shape: f32[8,32], index: 0, kind: input, shape index: {}]
  %s1 = inlined_call_operand.hbm [shape: f32[32,128], index: 1, kind: input, shape index: {}]
  %s2 = inlined_call_operand.vmem [shape: f32[1,128], index: 2, kind: input, shape index: {}]
  %s3 = inlined_call_operand.vmem [shape: f32[1,128], index: 3, kind: input, shape index: {}]
  %s4 = inlined_call_operand.vmem [shape: f32[1,128], index: 4, kind: input, shape index: {}]
  %s5 = inlined_call_operand.hbm [shape: f32[128,128], index: 5, kind: input, shape index: {}]
  %s6 = inlined_call_operand.vmem [shape: f32[1,128], index: 6, kind: input, shape index: {}]
  %s7 = inlined_call_operand.vmem [shape: f32[1,128], index: 7, kind: input, shape index: {}]
  %s8 = inlined_call_operand.vmem [shape: f32[1,128], index: 8, kind: input, shape index: {}]
  %s9 = inlined_call_operand.hbm [shape: f32[128,128], index: 9, kind: input, shape index: {}]
  %s10 = inlined_call_operand.vmem [shape: f32[1,128], index: 10, kind: input, shape index: {}]
  %s11 = inlined_call_operand.hbm [shape: f32[8,128], index: 11, kind: output, shape index: {}]
  %s12 = sld [smem:[#allocation0]]
  $region70: #{tpu_custom_call.1} parent=0
    _
  %s14 = ssub.s32 1, %s12
  %s15 = scalar_select 0, %s14, %s12
  $region1: #{tpu_custom_call.1} parent=0
    #allocation2 [shape = 'u8[4096]{0}', space=vmem, size = 0x1000, scoped, tag = 'input window, operand 0, single buffered']
    #allocation3 [shape = 's32[1]{0}', space=sflag, size = 0x4, scoped, tag = 'scoped memory for tpu_custom_call.1']
    #allocation4 [shape = 's32[1]{0}', space=sflag, size = 0x4, scoped, tag = 'scoped memory for tpu_custom_call.1']
    #allocation5 [shape = 'u8[16384]{0}', space=vmem, size = 0x4000, scoped, tag = 'input window, operand 1, single buffered']
    #allocation6 [shape = 's32[1]{0}', space=sflag, size = 0x4, scoped, tag = 'scoped memory for tpu_custom_call.1']
    #allocation7 [shape = 'u8[65536]{0}', space=vmem, size = 0x10000, scoped, tag = 'input window, operand 5, single buffered']
    #allocation8 [shape = 'u8[65536]{0}', space=vmem, size = 0x10000, scoped, tag = 'input window, operand 9, single buffered']
    #allocation9 [shape = 's32[1]{0}', space=sflag, size = 0x4, scoped, tag = 'scoped memory for tpu_custom_call.1']
    #allocation10 [shape = 'u8[4096]{0}', space=vmem, size = 0x1000, scoped, tag = 'output window, operand 0, single buffered']
    %16 = vsyncpa [#allocation3], 0
    %17 = vsyncpa [#allocation6], 0
    %18 = vsyncpa [#allocation9], 0
    %19 = vsyncpa [#allocation4], 0
    // Predicated region
    $region2: #{tpu_custom_call.1} parent=1 // pred_check
      _
    $region3: #{tpu_custom_call.1} parent=1 // pred_check_branch
      %21 = sbr.rel (0) target = $region5
    $region4: #{tpu_custom_call.1} parent=1 // pred_region
      %23 = vsyncadd [#allocation3], 0
      %s25 = sshll.u32 %s0, 4
      %s26 = int_to_ptr.hbm [resolvable:$true] %s25
      %s27 = sshll.u32 [#allocation2], 4
      %s28 = int_to_ptr.vmem [resolvable:$true] %s27
      %30 = dma.hbm_to_vmem [thread:$0]  %s26, 128, %s28, [#allocation3]
    $region5: #{tpu_custom_call.1} parent=1 // pred_fallthru
      _
    // Predicated region
    $region6: #{tpu_custom_call.1} parent=1 // pred_check
      _
    $region7: #{tpu_custom_call.1} parent=1 // pred_check_branch
      %32 = sbr.rel (0) target = $region9
    $region8: #{tpu_custom_call.1} parent=1 // pred_region
      %34 = vsyncadd [#allocation6], 0
      %s35 = sshll.u32 %s1, 4
      %s36 = int_to_ptr.hbm [resolvable:$true] %s35
      %s37 = sshll.u32 [#allocation5], 4
      %s38 = int_to_ptr.vmem [resolvable:$true] %s37
      %43 = dma.hbm_to_vmem [thread:$0]  %s36, 512, %s38, [#allocation6], 128, 128, 8
    $region9: #{tpu_custom_call.1} parent=1 // pred_fallthru
      _
    // Predicated region
    $region10: #{tpu_custom_call.1} parent=1 // pred_check
      _
    $region11: #{tpu_custom_call.1} parent=1 // pred_check_branch
      %45 = sbr.rel (0) target = $region13
    $region12: #{tpu_custom_call.1} parent=1 // pred_region
      _
    $region13: #{tpu_custom_call.1} parent=1 // pred_fallthru
      _
    // Predicated region
    $region14: #{tpu_custom_call.1} parent=1 // pred_check
      _
    $region15: #{tpu_custom_call.1} parent=1 // pred_check_branch
      %47 = sbr.rel (0) target = $region17
    $region16: #{tpu_custom_call.1} parent=1 // pred_region
      _
    $region17: #{tpu_custom_call.1} parent=1 // pred_fallthru
      _
    // Predicated region
    $region18: #{tpu_custom_call.1} parent=1 // pred_check
      _
    $region19: #{tpu_custom_call.1} parent=1 // pred_check_branch
      %49 = sbr.rel (0) target = $region21
    $region20: #{tpu_custom_call.1} parent=1 // pred_region
      _
    $region21: #{tpu_custom_call.1} parent=1 // pred_fallthru
      _
    // Predicated region
    $region22: #{tpu_custom_call.1} parent=1 // pred_check
      _
    $region23: #{tpu_custom_call.1} parent=1 // pred_check_branch
      %51 = sbr.rel (0) target = $region25
    $region24: #{tpu_custom_call.1} parent=1 // pred_region
      %53 = vsyncadd [#allocation6], 0
      %s54 = sshll.u32 %s5, 4
      %s55 = int_to_ptr.hbm [resolvable:$true] %s54
      %s56 = sshll.u32 [#allocation7], 4
      %s57 = int_to_ptr.vmem [resolvable:$true] %s56
      %62 = dma.hbm_to_vmem [thread:$0]  %s55, 2048, %s57, [#allocation6], 128, 128, 8
    $region25: #{tpu_custom_call.1} parent=1 // pred_fallthru
      _
    // Predicated region
    $region26: #{tpu_custom_call.1} parent=1 // pred_check
      _
    $region27: #{tpu_custom_call.1} parent=1 // pred_check_branch
      %64 = sbr.rel (0) target = $region29
    $region28: #{tpu_custom_call.1} parent=1 // pred_region
      _
    $region29: #{tpu_custom_call.1} parent=1 // pred_fallthru
      _
    // Predicated region
    $region30: #{tpu_custom_call.1} parent=1 // pred_check
      _
    $region31: #{tpu_custom_call.1} parent=1 // pred_check_branch
      %66 = sbr.rel (0) target = $region33
    $region32: #{tpu_custom_call.1} parent=1 // pred_region
      _
    $region33: #{tpu_custom_call.1} parent=1 // pred_fallthru
      _
    // Predicated region
    $region34: #{tpu_custom_call.1} parent=1 // pred_check
      _
    $region35: #{tpu_custom_call.1} parent=1 // pred_check_branch
      %68 = sbr.rel (0) target = $region37
    $region36: #{tpu_custom_call.1} parent=1 // pred_region
      _
    $region37: #{tpu_custom_call.1} parent=1 // pred_fallthru
      _
    // Predicated region
    $region38: #{tpu_custom_call.1} parent=1 // pred_check
      _
    $region39: #{tpu_custom_call.1} parent=1 // pred_check_branch
      %70 = sbr.rel (0) target = $region41
    $region40: #{tpu_custom_call.1} parent=1 // pred_region
      %72 = vsyncadd [#allocation9], 0
      %s73 = sshll.u32 %s9, 4
      %s74 = int_to_ptr.hbm [resolvable:$true] %s73
      %s75 = sshll.u32 [#allocation8], 4
      %s76 = int_to_ptr.vmem [resolvable:$true] %s75
      %81 = dma.hbm_to_vmem [thread:$0]  %s74, 2048, %s76, [#allocation9], 128, 128, 8
    $region41: #{tpu_custom_call.1} parent=1 // pred_fallthru
      _
    // Predicated region
    $region42: #{tpu_custom_call.1} parent=1 // pred_check
      _
    $region43: #{tpu_custom_call.1} parent=1 // pred_check_branch
      %83 = sbr.rel (0) target = $region45
    $region44: #{tpu_custom_call.1} parent=1 // pred_region
      _
    $region45: #{tpu_custom_call.1} parent=1 // pred_fallthru
      _
    // Predicated region
    $region46: #{tpu_custom_call.1} parent=1 // pred_check
      _
    $region47: #{tpu_custom_call.1} parent=1 // pred_check_branch
      %85 = sbr.rel (0) target = $region49
    $region48: #{tpu_custom_call.1} parent=1 // pred_region
      %87 = dma.done [#allocation3], 128
    $region49: #{tpu_custom_call.1} parent=1 // pred_fallthru
      _
    // Predicated region
    $region50: #{tpu_custom_call.1} parent=1 // pred_check
      _
    $region51: #{tpu_custom_call.1} parent=1 // pred_check_branch
      %89 = sbr.rel (0) target = $region53
    $region52: #{tpu_custom_call.1} parent=1 // pred_region
      %91 = dma.done [#allocation6], 512
    $region53: #{tpu_custom_call.1} parent=1 // pred_fallthru
      _
    // Predicated region
    $region54: #{tpu_custom_call.1} parent=1 // pred_check
      _
    $region55: #{tpu_custom_call.1} parent=1 // pred_check_branch
      %93 = sbr.rel (0) target = $region57
    $region56: #{tpu_custom_call.1} parent=1 // pred_region
      %95 = dma.done [#allocation6], 2048
    $region57: #{tpu_custom_call.1} parent=1 // pred_fallthru
      _
    // Predicated region
    $region58: #{tpu_custom_call.1} parent=1 // pred_check
      _
    $region59: #{tpu_custom_call.1} parent=1 // pred_check_branch
      %97 = sbr.rel (0) target = $region61
    $region60: #{tpu_custom_call.1} parent=1 // pred_region
      %99 = dma.done [#allocation9], 2048
    $region61: #{tpu_custom_call.1} parent=1 // pred_fallthru
      _
    %v100 = vld [vmem:[#allocation2] sm:$0xff]
    %v101 = vld [vmem:[#allocation5] sm:$0xff]
    %v102 = vld [vmem:[#allocation5 + $0x8] sm:$0xff]
    %v103 = vld [vmem:[#allocation5 + $0x10] sm:$0xff]
    %v104 = vld [vmem:[#allocation5 + $0x18] sm:$0xff]
    %v105 = vld [vmem:[%s2] sm:$0x1]
    %v107 = vperm.slane %v105, 0
    %vm109 = vcmask 261120
    %v111 = vsel %vm109, %v100, 0
    %113 = vmatpush.msra.mxu0 0.0
    %114 = vmatpush.msra.mxu0 0.0
    %115 = vmatpush.msra.mxu0 0.0
    %116 = vmatpush.msra.mxu0 0.0
    %117 = vmatpush.msra.mxu0 0.0
    %118 = vmatpush.msra.mxu0 0.0
    %119 = vmatpush.msra.mxu0 0.0
    %120 = vmatpush.msra.mxu0 0.0
    %121 = vmatpush.msra.mxu0 0.0
    %122 = vmatpush.msra.mxu0 0.0
    %123 = vmatpush.msra.mxu0 0.0
    %124 = vmatpush.msra.mxu0 0.0
    %125 = vmatpush.msra.mxu0 %v104
    %126 = vmatpush.msra.mxu0 %v103
    %127 = vmatpush.msra.mxu0 %v102
    %128 = vmatpush.msra.mxu0 %v101
    %129 = vmatmul.f32.gmra.mxu0 %v111
    %v130 = vpop.f32.mrf.mxu0
    %v131 = vadd.f32 %v107, %v130
    %132 = vdwg.mxu0
    %v133 = vld [vmem:[%s3] sm:$0x1]
    %v134 = vld [vmem:[%s4] sm:$0x1]
    %135 = vadd.xlane.f32.xlu0 %v131
    %v136 = vpop.xlane.xlu0 %135
    %v137 = vmul.f32 %v131, %v131
    %138 = vadd.xlane.f32.xlu0 %v137
    %v139 = vpop.xlane.xlu0 %138
    %v140 = vmul.f32 %v136, 0.03125
    %v141 = vmul.f32 %v139, 0.03125
    %v142 = vmul.f32 %v140, %v140
    %v143 = vsub.f32 %v141, %v142
    %v144 = vsub.f32 %v131, %v140
    %v145 = vadd.f32 %v143, 1e-05
    %v146 = vrsqrt.pop %v145
    %v147 = vmul.f32 %v146, %v145
    %v148 = vmul.f32 %v147, %v146
    %v149 = vmul.f32 0.5, %v148
    %v150 = vsub.f32 1.5, %v149
    %v151 = vmul.f32 %v146, %v150
    %vm152 = vweird.f32 %v145
    %vm153 = vweird.f32 %v146
    %vm154 = vmor %vm152, %vm153
    %v155 = vsel %vm154, %v146, %v151
    %v156 = vmul.f32 %v144, %v155
    %v158 = vperm.slane %v133, 0
    %v160 = vmul.f32 %v156, %v158
    %v162 = vperm.slane %v134, 0
    %v164 = vadd.f32 %v160, %v162
    %v165 = vmax.f32 %v164, 0.0
    %v166 = vld [vmem:[#allocation7] sm:$0xff]
    %v167 = vld [vmem:[#allocation7 + $0x8] sm:$0xff]
    %v168 = vld [vmem:[#allocation7 + $0x10] sm:$0xff]
    %v169 = vld [vmem:[#allocation7 + $0x18] sm:$0xff]
    %v170 = vld [vmem:[#allocation7 + $0x20] sm:$0xff]
    %v171 = vld [vmem:[#allocation7 + $0x28] sm:$0xff]
    %v172 = vld [vmem:[#allocation7 + $0x30] sm:$0xff]
    %v173 = vld [vmem:[#allocation7 + $0x38] sm:$0xff]
    %v174 = vld [vmem:[#allocation7 + $0x40] sm:$0xff]
    %v175 = vld [vmem:[#allocation7 + $0x48] sm:$0xff]
    %v176 = vld [vmem:[#allocation7 + $0x50] sm:$0xff]
    %v177 = vld [vmem:[#allocation7 + $0x58] sm:$0xff]
    %v178 = vld [vmem:[#allocation7 + $0x60] sm:$0xff]
    %v179 = vld [vmem:[#allocation7 + $0x68] sm:$0xff]
    %v180 = vld [vmem:[#allocation7 + $0x70] sm:$0xff]
    %v181 = vld [vmem:[#allocation7 + $0x78] sm:$0xff]
    %v182 = vld [vmem:[%s6] sm:$0x1]
    %v184 = vperm.slane %v182, 0
    %186 = vmatpush.msra.mxu0 %v181
    %187 = vmatpush.msra.mxu0 %v180
    %188 = vmatpush.msra.mxu0 %v179
    %189 = vmatpush.msra.mxu0 %v178
    %190 = vmatpush.msra.mxu0 %v177
    %191 = vmatpush.msra.mxu0 %v176
    %192 = vmatpush.msra.mxu0 %v175
    %193 = vmatpush.msra.mxu0 %v174
    %194 = vmatpush.msra.mxu0 %v173
    %195 = vmatpush.msra.mxu0 %v172
    %196 = vmatpush.msra.mxu0 %v171
    %197 = vmatpush.msra.mxu0 %v170
    %198 = vmatpush.msra.mxu0 %v169
    %199 = vmatpush.msra.mxu0 %v168
    %200 = vmatpush.msra.mxu0 %v167
    %201 = vmatpush.msra.mxu0 %v166
    %202 = vmatmul.f32.gmra.mxu0 %v165
    %v203 = vpop.f32.mrf.mxu0
    %v204 = vadd.f32 %v184, %v203
    %205 = vdwg.mxu0
    %v206 = vld [vmem:[%s7] sm:$0x1]
    %v207 = vld [vmem:[%s8] sm:$0x1]
    %208 = vadd.xlane.f32.xlu0 %v204
    %v209 = vpop.xlane.xlu0 %208
    %v210 = vmul.f32 %v204, %v204
    %211 = vadd.xlane.f32.xlu0 %v210
    %v212 = vpop.xlane.xlu0 %211
    %v213 = vmul.f32 %v209, 0.03125
    %v214 = vmul.f32 %v212, 0.03125
    %v215 = vmul.f32 %v213, %v213
    %v216 = vsub.f32 %v214, %v215
    %v217 = vsub.f32 %v204, %v213
    %v218 = vadd.f32 %v216, 1e-05
    %v219 = vrsqrt.pop %v218
    %v220 = vmul.f32 %v219, %v218
    %v221 = vmul.f32 %v220, %v219
    %v222 = vmul.f32 0.5, %v221
    %v223 = vsub.f32 1.5, %v222
    %v224 = vmul.f32 %v219, %v223
    %vm225 = vweird.f32 %v218
    %vm226 = vweird.f32 %v219
    %vm227 = vmor %vm225, %vm226
    %v228 = vsel %vm227, %v219, %v224
    %v229 = vmul.f32 %v217, %v228
    %v231 = vperm.slane %v206, 0
    %v233 = vmul.f32 %v229, %v231
    %v235 = vperm.slane %v207, 0
    %v237 = vadd.f32 %v233, %v235
    %v238 = vmax.f32 %v237, 0.0
    %v239 = vld [vmem:[#allocation8] sm:$0xff]
    %v240 = vld [vmem:[#allocation8 + $0x8] sm:$0xff]
    %v241 = vld [vmem:[#allocation8 + $0x10] sm:$0xff]
    %v242 = vld [vmem:[#allocation8 + $0x18] sm:$0xff]
    %v243 = vld [vmem:[#allocation8 + $0x20] sm:$0xff]
    %v244 = vld [vmem:[#allocation8 + $0x28] sm:$0xff]
    %v245 = vld [vmem:[#allocation8 + $0x30] sm:$0xff]
    %v246 = vld [vmem:[#allocation8 + $0x38] sm:$0xff]
    %v247 = vld [vmem:[#allocation8 + $0x40] sm:$0xff]
    %v248 = vld [vmem:[#allocation8 + $0x48] sm:$0xff]
    %v249 = vld [vmem:[#allocation8 + $0x50] sm:$0xff]
    %v250 = vld [vmem:[#allocation8 + $0x58] sm:$0xff]
    %v251 = vld [vmem:[#allocation8 + $0x60] sm:$0xff]
    %v252 = vld [vmem:[#allocation8 + $0x68] sm:$0xff]
    %v253 = vld [vmem:[#allocation8 + $0x70] sm:$0xff]
    %v254 = vld [vmem:[#allocation8 + $0x78] sm:$0xff]
    %v255 = vld [vmem:[%s10] sm:$0x1]
    %v257 = vperm.slane %v255, 0
    %259 = vmatpush.msra.mxu0 %v254
    %260 = vmatpush.msra.mxu0 %v253
    %261 = vmatpush.msra.mxu0 %v252
    %262 = vmatpush.msra.mxu0 %v251
    %263 = vmatpush.msra.mxu0 %v250
    %264 = vmatpush.msra.mxu0 %v249
    %265 = vmatpush.msra.mxu0 %v248
    %266 = vmatpush.msra.mxu0 %v247
    %267 = vmatpush.msra.mxu0 %v246
    %268 = vmatpush.msra.mxu0 %v245
    %269 = vmatpush.msra.mxu0 %v244
    %270 = vmatpush.msra.mxu0 %v243
    %271 = vmatpush.msra.mxu0 %v242
    %272 = vmatpush.msra.mxu0 %v241
    %273 = vmatpush.msra.mxu0 %v240
    %274 = vmatpush.msra.mxu0 %v239
    %275 = vmatmul.f32.gmra.mxu0 %v238
    %v276 = vpop.f32.mrf.mxu0
    %v277 = vadd.f32 %v257, %v276
    %278 = vdwg.mxu0
    %v279 = vxor.u32 %v277, 2147483648
    %v280 = vmul.f32 %v279, 1.442695
    %v281 = vpow.pop %v280
    %v282 = vadd.f32 %v281, 1.0
    %v283 = vrcp.pop %v282
    %v284 = vmul.f32 %v282, %v283
    %v285 = vsub.f32 1.0, %v284
    %v286 = vmul.f32 %v283, %v285
    %v287 = vadd.f32 %v283, %v286
    %vm288 = vweird.f32 %v282
    %vm289 = vweird.f32 %v283
    %vm290 = vmor %vm288, %vm289
    %v291 = vsel %vm290, %v283, %v287
    %v292 = vand.u32 2147483647, %v282
    %vm293 = vcmp.eq.f32.partialorder %v292, 8.507059e+37
    %v294 = vand.u32 %v282, 2147483648
    %v295 = vor.u32 1.1754944e-38, %v294
    %v296 = vsel %vm293, %v295, %v291
    %v297 = vmul.f32 1.0, %v296
    %298 = vst [vmem:[#allocation10] sm:$0xff] %v297
    // Predicated region
    $region62: #{tpu_custom_call.1} parent=1 // pred_check
      _
    $region63: #{tpu_custom_call.1} parent=1 // pred_check_branch
      %300 = sbr.rel (0) target = $region65
    $region64: #{tpu_custom_call.1} parent=1 // pred_region
      %302 = vsyncadd [#allocation4], 0
      %s304 = sshll.u32 [#allocation10], 4
      %s305 = int_to_ptr.vmem [resolvable:$true] %s304
      %s306 = sshll.u32 %s11, 4
      %s307 = int_to_ptr.hbm [resolvable:$true] %s306
      %309 = dma.vmem_to_hbm [thread:$0]  %s305, 128, %s307, [#allocation4]
    $region65: #{tpu_custom_call.1} parent=1 // pred_fallthru
      _
    // Predicated region
    $region66: #{tpu_custom_call.1} parent=1 // pred_check
      _
    $region67: #{tpu_custom_call.1} parent=1 // pred_check_branch
      %311 = sbr.rel (0) target = $region69
    $region68: #{tpu_custom_call.1} parent=1 // pred_region
      %313 = dma.done [#allocation4], 128
    $region69: #{tpu_custom_call.1} parent=1 // pred_fallthru
      _
    %314 = vsyncpa [#allocation3], 1
    %315 = vsyncpa [#allocation6], 1
    %316 = vsyncpa [#allocation9], 1
    %317 = vsyncpa [#allocation4], 1

// kernel: tpu_custom_call.1
$region0: #{tpu_custom_call.1}
  #allocation0 [shape = 'u32[]', space=smem, size = 0x4, offset = 0x4, fixed_abs, tag = 'smem constant byte address 0x4 - core index']
  #allocation1 [shape = 'u32[72,128]{1,0:T(1,128)}', space=vmem, size = 0x9000, scoped, tag = 'internal scratch']
  %s0 = inlined_call_operand.hbm [shape: f32[8,32], index: 0, kind: input, shape index: {}]
  %s1 = inlined_call_operand.hbm [shape: f32[32,128], index: 1, kind: input, shape index: {}]
  %s2 = inlined_call_operand.vmem [shape: f32[1,128], index: 2, kind: input, shape index: {}]
  %s3 = inlined_call_operand.vmem [shape: f32[1,128], index: 3, kind: input, shape index: {}]
  %s4 = inlined_call_operand.vmem [shape: f32[1,128], index: 4, kind: input, shape index: {}]
  %s5 = inlined_call_operand.hbm [shape: f32[128,128], index: 5, kind: input, shape index: {}]
  %s6 = inlined_call_operand.vmem [shape: f32[1,128], index: 6, kind: input, shape index: {}]
  %s7 = inlined_call_operand.vmem [shape: f32[1,128], index: 7, kind: input, shape index: {}]
  %s8 = inlined_call_operand.vmem [shape: f32[1,128], index: 8, kind: input, shape index: {}]
  %s9 = inlined_call_operand.hbm [shape: f32[128,128], index: 9, kind: input, shape index: {}]
  %s10 = inlined_call_operand.vmem [shape: f32[1,128], index: 10, kind: input, shape index: {}]
  %s11 = inlined_call_operand.hbm [shape: f32[8,128], index: 11, kind: output, shape index: {}]
  %s12 = sld [smem:[#allocation0]]
  $region70: #{tpu_custom_call.1} parent=0
    _
  %s14 = ssub.s32 1, %s12
  %s15 = scalar_select 0, %s14, %s12
  $region1: #{tpu_custom_call.1} parent=0
    #allocation2 [shape = 'u8[4096]{0}', space=vmem, size = 0x1000, scoped, tag = 'input window, operand 0, single buffered']
    #allocation3 [shape = 's32[1]{0}', space=sflag, size = 0x4, scoped, tag = 'scoped memory for tpu_custom_call.1']
    #allocation4 [shape = 's32[1]{0}', space=sflag, size = 0x4, scoped, tag = 'scoped memory for tpu_custom_call.1']
    #allocation5 [shape = 'u8[16384]{0}', space=vmem, size = 0x4000, scoped, tag = 'input window, operand 1, single buffered']
    #allocation6 [shape = 's32[1]{0}', space=sflag, size = 0x4, scoped, tag = 'scoped memory for tpu_custom_call.1']
    #allocation7 [shape = 'u8[65536]{0}', space=vmem, size = 0x10000, scoped, tag = 'input window, operand 5, single buffered']
    #allocation8 [shape = 'u8[65536]{0}', space=vmem, size = 0x10000, scoped, tag = 'input window, operand 9, single buffered']
    #allocation9 [shape = 's32[1]{0}', space=sflag, size = 0x4, scoped, tag = 'scoped memory for tpu_custom_call.1']
    #allocation10 [shape = 'u8[4096]{0}', space=vmem, size = 0x1000, scoped, tag = 'output window, operand 0, single buffered']
    %16 = vsyncpa [#allocation3], 0
    %17 = vsyncpa [#allocation6], 0
    %18 = vsyncpa [#allocation9], 0
    %19 = vsyncpa [#allocation4], 0
    // Predicated region
    $region2: #{tpu_custom_call.1} parent=1 // pred_check
      _
    $region3: #{tpu_custom_call.1} parent=1 // pred_check_branch
      %21 = sbr.rel (0) target = $region5
    $region4: #{tpu_custom_call.1} parent=1 // pred_region
      %23 = vsyncadd [#allocation3], 0
      %s25 = sshll.u32 %s0, 4
      %s26 = int_to_ptr.hbm [resolvable:$true] %s25
      %s27 = sshll.u32 [#allocation2], 4
      %s28 = int_to_ptr.vmem [resolvable:$true] %s27
      %30 = dma.hbm_to_vmem [thread:$0]  %s26, 128, %s28, [#allocation3]
    $region5: #{tpu_custom_call.1} parent=1 // pred_fallthru
      _
    // Predicated region
    $region6: #{tpu_custom_call.1} parent=1 // pred_check
      _
    $region7: #{tpu_custom_call.1} parent=1 // pred_check_branch
      %32 = sbr.rel (0) target = $region9
    $region8: #{tpu_custom_call.1} parent=1 // pred_region
      %34 = vsyncadd [#allocation6], 0
      %s35 = sshll.u32 %s1, 4
      %s36 = int_to_ptr.hbm [resolvable:$true] %s35
      %s37 = sshll.u32 [#allocation5], 4
      %s38 = int_to_ptr.vmem [resolvable:$true] %s37
      %43 = dma.hbm_to_vmem [thread:$0]  %s36, 512, %s38, [#allocation6], 128, 128, 8
    $region9: #{tpu_custom_call.1} parent=1 // pred_fallthru
      _
    // Predicated region
    $region10: #{tpu_custom_call.1} parent=1 // pred_check
      _
    $region11: #{tpu_custom_call.1} parent=1 // pred_check_branch
      %45 = sbr.rel (0) target = $region13
    $region12: #{tpu_custom_call.1} parent=1 // pred_region
      _
    $region13: #{tpu_custom_call.1} parent=1 // pred_fallthru
      _
    // Predicated region
    $region14: #{tpu_custom_call.1} parent=1 // pred_check
      _
    $region15: #{tpu_custom_call.1} parent=1 // pred_check_branch
      %47 = sbr.rel (0) target = $region17
    $region16: #{tpu_custom_call.1} parent=1 // pred_region
      _
    $region17: #{tpu_custom_call.1} parent=1 // pred_fallthru
      _
    // Predicated region
    $region18: #{tpu_custom_call.1} parent=1 // pred_check
      _
    $region19: #{tpu_custom_call.1} parent=1 // pred_check_branch
      %49 = sbr.rel (0) target = $region21
    $region20: #{tpu_custom_call.1} parent=1 // pred_region
      _
    $region21: #{tpu_custom_call.1} parent=1 // pred_fallthru
      _
    // Predicated region
    $region22: #{tpu_custom_call.1} parent=1 // pred_check
      _
    $region23: #{tpu_custom_call.1} parent=1 // pred_check_branch
      %51 = sbr.rel (0) target = $region25
    $region24: #{tpu_custom_call.1} parent=1 // pred_region
      %53 = vsyncadd [#allocation6], 0
      %s54 = sshll.u32 %s5, 4
      %s55 = int_to_ptr.hbm [resolvable:$true] %s54
      %s56 = sshll.u32 [#allocation7], 4
      %s57 = int_to_ptr.vmem [resolvable:$true] %s56
      %62 = dma.hbm_to_vmem [thread:$0]  %s55, 2048, %s57, [#allocation6], 128, 128, 8
    $region25: #{tpu_custom_call.1} parent=1 // pred_fallthru
      _
    // Predicated region
    $region26: #{tpu_custom_call.1} parent=1 // pred_check
      _
    $region27: #{tpu_custom_call.1} parent=1 // pred_check_branch
      %64 = sbr.rel (0) target = $region29
    $region28: #{tpu_custom_call.1} parent=1 // pred_region
      _
    $region29: #{tpu_custom_call.1} parent=1 // pred_fallthru
      _
    // Predicated region
    $region30: #{tpu_custom_call.1} parent=1 // pred_check
      _
    $region31: #{tpu_custom_call.1} parent=1 // pred_check_branch
      %66 = sbr.rel (0) target = $region33
    $region32: #{tpu_custom_call.1} parent=1 // pred_region
      _
    $region33: #{tpu_custom_call.1} parent=1 // pred_fallthru
      _
    // Predicated region
    $region34: #{tpu_custom_call.1} parent=1 // pred_check
      _
    $region35: #{tpu_custom_call.1} parent=1 // pred_check_branch
      %68 = sbr.rel (0) target = $region37
    $region36: #{tpu_custom_call.1} parent=1 // pred_region
      _
    $region37: #{tpu_custom_call.1} parent=1 // pred_fallthru
      _
    // Predicated region
    $region38: #{tpu_custom_call.1} parent=1 // pred_check
      _
    $region39: #{tpu_custom_call.1} parent=1 // pred_check_branch
      %70 = sbr.rel (0) target = $region41
    $region40: #{tpu_custom_call.1} parent=1 // pred_region
      %72 = vsyncadd [#allocation9], 0
      %s73 = sshll.u32 %s9, 4
      %s74 = int_to_ptr.hbm [resolvable:$true] %s73
      %s75 = sshll.u32 [#allocation8], 4
      %s76 = int_to_ptr.vmem [resolvable:$true] %s75
      %81 = dma.hbm_to_vmem [thread:$0]  %s74, 2048, %s76, [#allocation9], 128, 128, 8
    $region41: #{tpu_custom_call.1} parent=1 // pred_fallthru
      _
    // Predicated region
    $region42: #{tpu_custom_call.1} parent=1 // pred_check
      _
    $region43: #{tpu_custom_call.1} parent=1 // pred_check_branch
      %83 = sbr.rel (0) target = $region45
    $region44: #{tpu_custom_call.1} parent=1 // pred_region
      _
    $region45: #{tpu_custom_call.1} parent=1 // pred_fallthru
      _
    // Predicated region
    $region46: #{tpu_custom_call.1} parent=1 // pred_check
      _
    $region47: #{tpu_custom_call.1} parent=1 // pred_check_branch
      %85 = sbr.rel (0) target = $region49
    $region48: #{tpu_custom_call.1} parent=1 // pred_region
      %87 = dma.done [#allocation3], 128
    $region49: #{tpu_custom_call.1} parent=1 // pred_fallthru
      _
    // Predicated region
    $region50: #{tpu_custom_call.1} parent=1 // pred_check
      _
    $region51: #{tpu_custom_call.1} parent=1 // pred_check_branch
      %89 = sbr.rel (0) target = $region53
    $region52: #{tpu_custom_call.1} parent=1 // pred_region
      %91 = dma.done [#allocation6], 512
    $region53: #{tpu_custom_call.1} parent=1 // pred_fallthru
      _
    // Predicated region
    $region54: #{tpu_custom_call.1} parent=1 // pred_check
      _
    $region55: #{tpu_custom_call.1} parent=1 // pred_check_branch
      %93 = sbr.rel (0) target = $region57
    $region56: #{tpu_custom_call.1} parent=1 // pred_region
      %95 = dma.done [#allocation6], 2048
    $region57: #{tpu_custom_call.1} parent=1 // pred_fallthru
      _
    // Predicated region
    $region58: #{tpu_custom_call.1} parent=1 // pred_check
      _
    $region59: #{tpu_custom_call.1} parent=1 // pred_check_branch
      %97 = sbr.rel (0) target = $region61
    $region60: #{tpu_custom_call.1} parent=1 // pred_region
      %99 = dma.done [#allocation9], 2048
    $region61: #{tpu_custom_call.1} parent=1 // pred_fallthru
      _
    %v100 = vld [vmem:[#allocation2] sm:$0xff]
    %v101 = vld [vmem:[#allocation5] sm:$0xff]
    %v102 = vld [vmem:[#allocation5 + $0x8] sm:$0xff]
    %v103 = vld [vmem:[#allocation5 + $0x10] sm:$0xff]
    %v104 = vld [vmem:[#allocation5 + $0x18] sm:$0xff]
    %v105 = vld [vmem:[%s2] sm:$0x1]
    %v107 = vperm.slane %v105, 0
    %vm109 = vcmask 261120
    %v111 = vsel %vm109, %v100, 0
    %113 = vmatpush.msra.mxu0 0.0
    %114 = vmatpush.msra.mxu0 0.0
    %115 = vmatpush.msra.mxu0 0.0
    %116 = vmatpush.msra.mxu0 0.0
    %117 = vmatpush.msra.mxu0 0.0
    %118 = vmatpush.msra.mxu0 0.0
    %119 = vmatpush.msra.mxu0 0.0
    %120 = vmatpush.msra.mxu0 0.0
    %121 = vmatpush.msra.mxu0 0.0
    %122 = vmatpush.msra.mxu0 0.0
    %123 = vmatpush.msra.mxu0 0.0
    %124 = vmatpush.msra.mxu0 0.0
    %125 = vmatpush.msra.mxu0 %v104
    %126 = vmatpush.msra.mxu0 %v103
    %127 = vmatpush.msra.mxu0 %v102
    %128 = vmatpush.msra.mxu0 %v101
    %129 = vmatmul.f32.gmra.mxu0 %v111
    %v130 = vpop.f32.mrf.mxu0
    %v131 = vadd.f32 %v107, %v130
    %132 = vdwg.mxu0
    %v133 = vld [vmem:[%s3] sm:$0x1]
    %v134 = vld [vmem:[%s4] sm:$0x1]
    %135 = vadd.xlane.f32.xlu0 %v131
    %v136 = vpop.xlane.xlu0 %135
    %v137 = vmul.f32 %v131, %v131
    %138 = vadd.xlane.f32.xlu0 %v137
    %v139 = vpop.xlane.xlu0 %138
    %v140 = vmul.f32 %v136, 0.03125
    %v141 = vmul.f32 %v139, 0.03125
    %v142 = vmul.f32 %v140, %v140
    %v143 = vsub.f32 %v141, %v142
    %v144 = vsub.f32 %v131, %v140
    %v145 = vadd.f32 %v143, 1e-05
    %v146 = vrsqrt.pop %v145
    %v147 = vmul.f32 %v146, %v145
    %v148 = vmul.f32 %v147, %v146
    %v149 = vmul.f32 0.5, %v148
    %v150 = vsub.f32 1.5, %v149
    %v151 = vmul.f32 %v146, %v150
    %vm152 = vweird.f32 %v145
    %vm153 = vweird.f32 %v146
    %vm154 = vmor %vm152, %vm153
    %v155 = vsel %vm154, %v146, %v151
    %v156 = vmul.f32 %v144, %v155
    %v158 = vperm.slane %v133, 0
    %v160 = vmul.f32 %v156, %v158
    %v162 = vperm.slane %v134, 0
    %v164 = vadd.f32 %v160, %v162
    %v165 = vmax.f32 %v164, 0.0
    %v166 = vld [vmem:[#allocation7] sm:$0xff]
    %v167 = vld [vmem:[#allocation7 + $0x8] sm:$0xff]
    %v168 = vld [vmem:[#allocation7 + $0x10] sm:$0xff]
    %v169 = vld [vmem:[#allocation7 + $0x18] sm:$0xff]
    %v170 = vld [vmem:[#allocation7 + $0x20] sm:$0xff]
    %v171 = vld [vmem:[#allocation7 + $0x28] sm:$0xff]
    %v172 = vld [vmem:[#allocation7 + $0x30] sm:$0xff]
    %v173 = vld [vmem:[#allocation7 + $0x38] sm:$0xff]
    %v174 = vld [vmem:[#allocation7 + $0x40] sm:$0xff]
    %v175 = vld [vmem:[#allocation7 + $0x48] sm:$0xff]
    %v176 = vld [vmem:[#allocation7 + $0x50] sm:$0xff]
    %v177 = vld [vmem:[#allocation7 + $0x58] sm:$0xff]
    %v178 = vld [vmem:[#allocation7 + $0x60] sm:$0xff]
    %v179 = vld [vmem:[#allocation7 + $0x68] sm:$0xff]
    %v180 = vld [vmem:[#allocation7 + $0x70] sm:$0xff]
    %v181 = vld [vmem:[#allocation7 + $0x78] sm:$0xff]
    %v182 = vld [vmem:[%s6] sm:$0x1]
    %v184 = vperm.slane %v182, 0
    %186 = vmatpush.msra.mxu0 %v181
    %187 = vmatpush.msra.mxu0 %v180
    %188 = vmatpush.msra.mxu0 %v179
    %189 = vmatpush.msra.mxu0 %v178
    %190 = vmatpush.msra.mxu0 %v177
    %191 = vmatpush.msra.mxu0 %v176
    %192 = vmatpush.msra.mxu0 %v175
    %193 = vmatpush.msra.mxu0 %v174
    %194 = vmatpush.msra.mxu0 %v173
    %195 = vmatpush.msra.mxu0 %v172
    %196 = vmatpush.msra.mxu0 %v171
    %197 = vmatpush.msra.mxu0 %v170
    %198 = vmatpush.msra.mxu0 %v169
    %199 = vmatpush.msra.mxu0 %v168
    %200 = vmatpush.msra.mxu0 %v167
    %201 = vmatpush.msra.mxu0 %v166
    %202 = vmatmul.f32.gmra.mxu0 %v165
    %v203 = vpop.f32.mrf.mxu0
    %v204 = vadd.f32 %v184, %v203
    %205 = vdwg.mxu0
    %v206 = vld [vmem:[%s7] sm:$0x1]
    %v207 = vld [vmem:[%s8] sm:$0x1]
    %208 = vadd.xlane.f32.xlu0 %v204
    %v209 = vpop.xlane.xlu0 %208
    %v210 = vmul.f32 %v204, %v204
    %211 = vadd.xlane.f32.xlu0 %v210
    %v212 = vpop.xlane.xlu0 %211
    %v213 = vmul.f32 %v209, 0.03125
    %v214 = vmul.f32 %v212, 0.03125
    %v215 = vmul.f32 %v213, %v213
    %v216 = vsub.f32 %v214, %v215
    %v217 = vsub.f32 %v204, %v213
    %v218 = vadd.f32 %v216, 1e-05
    %v219 = vrsqrt.pop %v218
    %v220 = vmul.f32 %v219, %v218
    %v221 = vmul.f32 %v220, %v219
    %v222 = vmul.f32 0.5, %v221
    %v223 = vsub.f32 1.5, %v222
    %v224 = vmul.f32 %v219, %v223
    %vm225 = vweird.f32 %v218
    %vm226 = vweird.f32 %v219
    %vm227 = vmor %vm225, %vm226
    %v228 = vsel %vm227, %v219, %v224
    %v229 = vmul.f32 %v217, %v228
    %v231 = vperm.slane %v206, 0
    %v233 = vmul.f32 %v229, %v231
    %v235 = vperm.slane %v207, 0
    %v237 = vadd.f32 %v233, %v235
    %v238 = vmax.f32 %v237, 0.0
    %v239 = vld [vmem:[#allocation8] sm:$0xff]
    %v240 = vld [vmem:[#allocation8 + $0x8] sm:$0xff]
    %v241 = vld [vmem:[#allocation8 + $0x10] sm:$0xff]
    %v242 = vld [vmem:[#allocation8 + $0x18] sm:$0xff]
    %v243 = vld [vmem:[#allocation8 + $0x20] sm:$0xff]
    %v244 = vld [vmem:[#allocation8 + $0x28] sm:$0xff]
    %v245 = vld [vmem:[#allocation8 + $0x30] sm:$0xff]
    %v246 = vld [vmem:[#allocation8 + $0x38] sm:$0xff]
    %v247 = vld [vmem:[#allocation8 + $0x40] sm:$0xff]
    %v248 = vld [vmem:[#allocation8 + $0x48] sm:$0xff]
    %v249 = vld [vmem:[#allocation8 + $0x50] sm:$0xff]
    %v250 = vld [vmem:[#allocation8 + $0x58] sm:$0xff]
    %v251 = vld [vmem:[#allocation8 + $0x60] sm:$0xff]
    %v252 = vld [vmem:[#allocation8 + $0x68] sm:$0xff]
    %v253 = vld [vmem:[#allocation8 + $0x70] sm:$0xff]
    %v254 = vld [vmem:[#allocation8 + $0x78] sm:$0xff]
    %v255 = vld [vmem:[%s10] sm:$0x1]
    %v257 = vperm.slane %v255, 0
    %259 = vmatpush.msra.mxu0 %v254
    %260 = vmatpush.msra.mxu0 %v253
    %261 = vmatpush.msra.mxu0 %v252
    %262 = vmatpush.msra.mxu0 %v251
    %263 = vmatpush.msra.mxu0 %v250
    %264 = vmatpush.msra.mxu0 %v249
    %265 = vmatpush.msra.mxu0 %v248
    %266 = vmatpush.msra.mxu0 %v247
    %267 = vmatpush.msra.mxu0 %v246
    %268 = vmatpush.msra.mxu0 %v245
    %269 = vmatpush.msra.mxu0 %v244
    %270 = vmatpush.msra.mxu0 %v243
    %271 = vmatpush.msra.mxu0 %v242
    %272 = vmatpush.msra.mxu0 %v241
    %273 = vmatpush.msra.mxu0 %v240
    %274 = vmatpush.msra.mxu0 %v239
    %275 = vmatmul.f32.gmra.mxu0 %v238
    %v276 = vpop.f32.mrf.mxu0
    %v277 = vadd.f32 %v257, %v276
    %278 = vdwg.mxu0
    %v279 = vxor.u32 %v277, 2147483648
    %v280 = vmul.f32 %v279, 1.442695
    %v281 = vpow.pop %v280
    %v282 = vadd.f32 %v281, 1.0
    %v283 = vrcp.pop %v282
    %v284 = vmul.f32 %v282, %v283
    %v285 = vsub.f32 1.0, %v284
    %v286 = vmul.f32 %v283, %v285
    %v287 = vadd.f32 %v283, %v286
    %vm288 = vweird.f32 %v282
    %vm289 = vweird.f32 %v283
    %vm290 = vmor %vm288, %vm289
    %v291 = vsel %vm290, %v283, %v287
    %v292 = vand.u32 2147483647, %v282
    %vm293 = vcmp.eq.f32.partialorder %v292, 8.507059e+37
    %v294 = vand.u32 %v282, 2147483648
    %v295 = vor.u32 1.1754944e-38, %v294
    %v296 = vsel %vm293, %v295, %v291
    %v297 = vmul.f32 1.0, %v296
    %298 = vst [vmem:[#allocation10] sm:$0xff] %v297
    // Predicated region
    $region62: #{tpu_custom_call.1} parent=1 // pred_check
      _
    $region63: #{tpu_custom_call.1} parent=1 // pred_check_branch
      %300 = sbr.rel (0) target = $region65
    $region64: #{tpu_custom_call.1} parent=1 // pred_region
      %302 = vsyncadd [#allocation4], 0
      %s304 = sshll.u32 [#allocation10], 4
      %s305 = int_to_ptr.vmem [resolvable:$true] %s304
      %s306 = sshll.u32 %s11, 4
      %s307 = int_to_ptr.hbm [resolvable:$true] %s306
      %309 = dma.vmem_to_hbm [thread:$0]  %s305, 128, %s307, [#allocation4]
    $region65: #{tpu_custom_call.1} parent=1 // pred_fallthru
      _
    // Predicated region
    $region66: #{tpu_custom_call.1} parent=1 // pred_check
      _
    $region67: #{tpu_custom_call.1} parent=1 // pred_check_branch
      %311 = sbr.rel (0) target = $region69
    $region68: #{tpu_custom_call.1} parent=1 // pred_region
      %313 = dma.done [#allocation4], 128
    $region69: #{tpu_custom_call.1} parent=1 // pred_fallthru
      _
    %314 = vsyncpa [#allocation3], 1
    %315 = vsyncpa [#allocation6], 1
    %316 = vsyncpa [#allocation9], 1
    %317 = vsyncpa [#allocation4], 1

</llo_original>
